<compile_context>
chip_gen: v7x
topology: tpu7x:2x2x1
jax: 0.10.0
libtpu: 0.0.40
codegen_flags: <defaults>
</compile_context>

<pallas_src>
import jax
import jax.numpy as jnp
from jax.experimental import pallas as pl
from jax.experimental.pallas import tpu as pltpu


# ---------------------------------------------------------------------------
# Pallas kernel: one fused matmul + position-embedding epilogue
# ---------------------------------------------------------------------------
def vit_input_kernel(p_ref, w_ref, pos_ref, o_ref):
    # p_ref  : (tl, P) bf16  patch rows for this (batch, L-tile) block
    # w_ref  : (P,  E) bf16  fused weight  w_pe @ w_m1 @ w_m2   (resident)
    # pos_ref: (tl, E) f32   position embedding + fused bias    (reused across batch)
    # o_ref  : (tl, E) f32
    y = jnp.dot(p_ref[...], w_ref[...], preferred_element_type=jnp.float32)
    o_ref[...] = (y + pos_ref[...]).astype(o_ref.dtype)


# ---------------------------------------------------------------------------
# Patch extraction (unfoldNd + permute(0,2,1) semantics) — plain JAX glue
# ---------------------------------------------------------------------------
def image_to_patches_3d(x, patch_size):
    """(B, C, D, H, W) -> (B, L, C*pd*ph*pw) with torch Unfold channel/offset order."""
    B, C, D, H, W = x.shape
    pd, ph, pw = patch_size
    nd, nh, nw = D // pd, H // ph, W // pw
    x = x.reshape(B, C, nd, pd, nh, ph, nw, pw)
    x = jnp.transpose(x, (0, 2, 4, 6, 1, 3, 5, 7))
    return x.reshape(B, nd * nh * nw, C * pd * ph * pw)


# ---------------------------------------------------------------------------
# Tile-size selection from device VMEM
# ---------------------------------------------------------------------------
def _vmem_capacity_bytes():
    try:
        return int(pltpu.get_tpu_info().vmem_capacity_bytes)
    except Exception:
        return 64 * 1024 * 1024  # v7x physical; conservative fallback


def _working_set_bytes(tl, P, E):
    # double-buffered streams + (still double-buffered) constant weight
    return (2 * tl * P * 2      # patch tile, bf16
            + 2 * tl * E * 4    # pos tile, f32
            + 2 * tl * E * 4    # out tile, f32
            + 2 * P * E * 2)    # fused weight, bf16


def _choose_patch_tile(L, B, P, E, vmem_budget):
    """Largest L-tile (divisor of L, sublane-friendly) fitting the VMEM budget."""
    cands = [d for d in range(1, L + 1)
             if L % d == 0 and (d % 16 == 0 or d == L)]
    cands.sort(reverse=True)
    fitting = [d for d in cands if _working_set_bytes(d, P, E) <= vmem_budget]
    if not fitting:
        fitting = [cands[-1]]
    tl = fitting[0]
    # v7x megacore: prefer >= 4 total grid steps (>= 2 per TensorCore) if that does
    # not shrink the tile below 256 rows.
    if (L // tl) * B < 4:
        for d in fitting:
            if (L // d) * B >= 4 and d >= 256:
                tl = d
                break
    return tl


# ---------------------------------------------------------------------------
# Forward wrapper
# ---------------------------------------------------------------------------
def vision_transformer_input(x, params, patch_size):
    """Forward of VisionTransformerInput (frozen MISTRAL block stubbed to identity)."""
    E = params["w_pe_t"].shape[1]

    # Patchify in bf16 (convert fuses with the repack transpose: one HBM pass).
    patches = image_to_patches_3d(x.astype(jnp.bfloat16), patch_size)  # (B, L, P)
    B, L, P = patches.shape

    # --- algebraic fusion of the linear chain (no nonlinearity in between) -------
    # TODO(synk): MISTRALTransformer (`self.llm`) needs the frozen mistral-7B
    # checkpoint and is unavailable; with `llm(h) + h` reduced to `h`, the chain
    # patch_embed -> mapper1 -> mapper2 collapses exactly to one (P, E) matmul.
    # If the LLM block is reinstated, only w_pe_t @ w_m1_t may be pre-fused.
    w_fused = (params["w_pe_t"] @ params["w_m1_t"]) @ params["w_m2_t"]   # (P, E) f32
    b_fused = (params["b_pe"] @ params["w_m1_t"]) @ params["w_m2_t"]     # (1, E) f32
    pos_bias = (params["pos_embed"][0] + b_fused).astype(jnp.float32)    # (L, E) f32
    w_bf16 = w_fused.astype(jnp.bfloat16)                                # (P, E)

    cap = _vmem_capacity_bytes()
    tl = _choose_patch_tile(L, B, P, E, vmem_budget=int(cap * 0.45))
    ws = _working_set_bytes(tl, P, E)
    vmem_limit = int(min(cap - (2 << 20), max(3 * ws, 32 * (1 << 20))))

    grid = (L // tl, B)  # L-tiles outer, batch inner -> pos tile reused across batch
    out = pl.pallas_call(
        vit_input_kernel,
        out_shape=jax.ShapeDtypeStruct((B, L, E), jnp.float32),
        grid_spec=pltpu.PrefetchScalarGridSpec(
            num_scalar_prefetch=0,
            grid=grid,
            in_specs=[
                # patches: one (tl, P) row tile of batch b (leading dim squeezed)
                pl.BlockSpec((None, tl, P), lambda j, b: (b, j, 0)),
                # fused weight: constant index_map -> DMA'd once, resident
                pl.BlockSpec((P, E), lambda j, b: (0, 0)),
                # pos+bias: indexed by L-tile only -> never batch-broadcast,
                # re-used (no re-DMA) across the inner batch axis
                pl.BlockSpec((tl, E), lambda j, b: (j, 0)),
            ],
            out_specs=pl.BlockSpec((None, tl, E), lambda j, b: (b, j, 0)),
        ),
        compiler_params=pltpu.CompilerParams(
            dimension_semantics=("parallel", "parallel"),
            vmem_limit_bytes=vmem_limit,
        ),
        cost_estimate=pl.CostEstimate(
            flops=2 * B * L * P * E,
            transcendentals=0,
            bytes_accessed=(B * L * P * 2     # patches (bf16), read once
                            + P * E * 2       # fused weight, read once
                            + L * E * 4       # pos+bias, read once
                            + B * L * E * 4), # output (f32), written once
        ),
    )(patches, w_bf16, pos_bias)

    # Already in the module's (B, L, E) layout — no post-kernel transpose.
    return out


# ---------------------------------------------------------------------------
# Pure-JAX f32 reference (unfused chain) for correctness checking
# ---------------------------------------------------------------------------
def reference_forward(x, params, patch_size):
    patches = image_to_patches_3d(x, patch_size)
    h1 = patches @ params["w_pe_t"] + params["b_pe"][0]
    h2 = h1 @ params["w_m1_t"]
    # TODO(synk): frozen MISTRALTransformer residual (llm(h) + h) stubbed to h.
    h3 = h2 @ params["w_m2_t"]
    return h3 + params["pos_embed"]


if __name__ == "__main__":
    # -------------------------- small config -------------------------------
    image_size = (8, 16, 16)       # (D, H, W)
    patch_size = (2, 4, 4)
    in_channels = 4
    embed_size = 32
    llm_dim = 128                  # small stand-in for the 4096-dim mistral width
    batch = 4

    pd, ph, pw = patch_size
    patch_dim = pd * ph * pw * in_channels                                   # 128
    num_patches = ((image_size[0] // pd) * (image_size[1] // ph)
                   * (image_size[2] // pw))                                  # 64

    # ---------------------- deterministic parameters ------------------------
    key = jax.random.PRNGKey(0)
    k_x, k_wpe, k_bpe, k_wm1, k_wm2, k_pos = jax.random.split(key, 6)

    x = jax.random.normal(k_x, (batch, in_channels, *image_size), dtype=jnp.float32)

    params = {
        # nn.Linear(patch_dim, embed_size): weight (E, P) -> stored transposed (P, E)
        "w_pe_t": jax.random.normal(k_wpe, (patch_dim, embed_size), jnp.float32) * 0.02,
        "b_pe": jax.random.normal(k_bpe, (1, embed_size), jnp.float32) * 0.02,
        # nn.Linear(embed_size, llm_dim, bias=False): weight (LLM, E) -> (E, LLM)
        "w_m1_t": jax.random.normal(k_wm1, (embed_size, llm_dim), jnp.float32) * 0.02,
        # nn.Linear(llm_dim, embed_size, bias=False): weight (E, LLM) -> (LLM, E)
        "w_m2_t": jax.random.normal(k_wm2, (llm_dim, embed_size), jnp.float32) * 0.02,
        # nn.Parameter(torch.randn(1, num_patches, embed_size))
        "pos_embed": jax.random.normal(k_pos, (1, num_patches, embed_size), jnp.float32),
    }

    out = vision_transformer_input(x, params, patch_size)
    out = jax.block_until_ready(out)

    ref = reference_forward(x, params, patch_size)
    assert out.shape == (batch, num_patches, embed_size), out.shape
    # bf16 matmul operands (f32 accumulation) + algebraic weight fusion -> relax tol
    assert jnp.allclose(out, ref, atol=1e-2, rtol=1e-2), "kernel mismatch vs reference"

    print("KERNEL_OK")
</pallas_src>

<mosaic_0001>
module attributes {stable_mosaic.version = 11 : i64} {
  func.func @vit_input_kernel(%arg0: i32, %arg1: i32, %arg2: memref<1x64x128xbf16, #tpu.memory_space<vmem>>, %arg3: memref<128x32xbf16, #tpu.memory_space<vmem>>, %arg4: memref<64x32xf32, #tpu.memory_space<vmem>>, %arg5: memref<1x64x32xf32, #tpu.memory_space<vmem>>) attributes {dimension_semantics = [#tpu.dimension_semantics<parallel>, #tpu.dimension_semantics<parallel>], iteration_bounds = array<i64: 1, 4>, scalar_prefetch = 0 : i64, scratch_operands = 0 : i64, tpu.core_type = #tpu.core_type<tc>, window_params = [{transform_indices = @transform_0, window_bounds = array<i64: 1, 64, 128>}, {pipeline_mode = #tpu.pipeline_mode<synchronous>, transform_indices = @transform_1, window_bounds = array<i64: 128, 32>}, {transform_indices = @transform_2, window_bounds = array<i64: 64, 32>}, {transform_indices = @transform_3, window_bounds = array<i64: 1, 64, 32>}]} {
    %c0 = arith.constant 0 : index
    %c0_0 = arith.constant 0 : index
    %c0_1 = arith.constant 0 : index
    %0 = vector.load %arg2[%c0, %c0_0, %c0_1] : memref<1x64x128xbf16, #tpu.memory_space<vmem>>, vector<1x64x128xbf16>
    %1 = vector.shape_cast %0 : vector<1x64x128xbf16> to vector<64x128xbf16>
    %c0_2 = arith.constant 0 : index
    %c0_3 = arith.constant 0 : index
    %2 = vector.load %arg3[%c0_2, %c0_3] : memref<128x32xbf16, #tpu.memory_space<vmem>>, vector<128x32xbf16>
    %cst = arith.constant dense<0.000000e+00> : vector<64x32xf32>
    %3 = tpu.matmul %1, %2, %cst {dimension_numbers = #tpu.dot_dimension_numbers<[1], [0], [0], [1], [0, 0, 1, 1], [], []>} : vector<64x128xbf16>, vector<128x32xbf16>, vector<64x32xf32> -> vector<64x32xf32>
    %c0_4 = arith.constant 0 : index
    %c0_5 = arith.constant 0 : index
    %4 = vector.load %arg4[%c0_4, %c0_5] : memref<64x32xf32, #tpu.memory_space<vmem>>, vector<64x32xf32>
    %5 = arith.addf %3, %4 : vector<64x32xf32>
    %c0_6 = arith.constant 0 : index
    %c0_7 = arith.constant 0 : index
    %c0_8 = arith.constant 0 : index
    %6 = vector.load %arg5[%c0_6, %c0_7, %c0_8] : memref<1x64x32xf32, #tpu.memory_space<vmem>>, vector<1x64x32xf32>
    %7 = vector.shape_cast %6 : vector<1x64x32xf32> to vector<64x32xf32>
    %8 = vector.shape_cast %5 : vector<64x32xf32> to vector<1x64x32xf32>
    tpu.vector_store %arg5[%c0_6, %c0_7, %c0_8], %8 {strides = array<i32>} : memref<1x64x32xf32, #tpu.memory_space<vmem>>, vector<1x64x32xf32>,
    return
  }
  func.func @transform_0(%arg0: i32, %arg1: i32) -> (i32, i32, i32) {
    %c0_i32 = arith.constant 0 : i32
    %c0_i32_0 = arith.constant 0 : i32
    return %arg1, %arg0, %c0_i32 : i32, i32, i32
  }
  func.func @transform_1(%arg0: i32, %arg1: i32) -> (i32, i32) {
    %c0_i32 = arith.constant 0 : i32
    %c0_i32_0 = arith.constant 0 : i32
    %c0_i32_1 = arith.constant 0 : i32
    return %c0_i32, %c0_i32_0 : i32, i32
  }
  func.func @transform_2(%arg0: i32, %arg1: i32) -> (i32, i32) {
    %c0_i32 = arith.constant 0 : i32
    %c0_i32_0 = arith.constant 0 : i32
    return %arg0, %c0_i32 : i32, i32
  }
  func.func @transform_3(%arg0: i32, %arg1: i32) -> (i32, i32, i32) {
    %c0_i32 = arith.constant 0 : i32
    %c0_i32_0 = arith.constant 0 : i32
    return %arg1, %arg0, %c0_i32 : i32, i32, i32
  }
}

</mosaic_0001>

<llo_original>
// kernel: tpu_custom_call.1
$region0: #{tpu_custom_call.1}
  #allocation0 [shape = 'u32[]', space=smem, size = 0x4, offset = 0x4, fixed_abs, tag = 'smem constant byte address 0x4 - core index']
  #allocation1 [shape = 'u32[144,128]{1,0:T(1,128)}', space=vmem, size = 0x12000, scoped, tag = 'internal scratch']
  %s0 = inlined_call_operand.vmem [shape: bf16[4,64,128], index: 0, kind: input, shape index: {}]
  %s1 = inlined_call_operand.vmem [shape: bf16[128,32], index: 1, kind: input, shape index: {}]
  %s2 = inlined_call_operand.vmem [shape: f32[64,32], index: 2, kind: input, shape index: {}]
  %s3 = inlined_call_operand.vmem [shape: f32[4,64,32], index: 3, kind: output, shape index: {}]
  %s4 = sld [smem:[#allocation0]]
  $region45: #{tpu_custom_call.1} parent=0
    _
  %s6 = ssub.s32 1, %s4
  %s7 = scalar_select 0, %s6, %s4
  loop: start=0, step=1, limit=6
  $region2: #{tpu_custom_call.1} parent=0 // loop_pre_header
    _
  $region3: #{tpu_custom_call.1} parent=0 // loop_header
    %s9 = sphi 0, %s13
    %p10 = scmp.ge.s32.totalorder %s9, 6
    %s16 = sphi 0, %s28
    %s17 = sphi 0, %s24
    %s18 = sphi 0, %s16
    %s19 = sphi 0, %s17
    %s20 = sphi 0, %s18
    %s21 = sphi 0, %s19
    %s33 = sphi 0, %s35
    %s36 = sphi 0, %s33
    %s37 = sphi 0, %s36
    %s53 = sphi 0, %s37
    %s57 = sphi 0, %s57
    %s59 = sphi 0, %s57
    %s60 = sphi 0, %s59
    %s74 = sphi 0, %s60
    %s80 = sphi 0, %s82
    %s83 = sphi 0, %s80
    %s84 = sphi 0, %s83
    %s100 = sphi 0, %s84
    %s108 = sphi 0, %s110
    %s111 = sphi 0, %s108
    %s112 = sphi 0, %s111
    %s128 = sphi 0, %s112
  $region4: #{tpu_custom_call.1} parent=0 // loop_header_branch
    %12 = sbr.rel (%p10) target = $region8
  $region5: #{tpu_custom_call.1} parent=0 // loop_body
    %s14 = ssub.s32 %s9, 1
    %s15 = ssub.s32 %s9, 2
    %s22 = sadd.s32 1, %s17
    %p23 = scmp.ge.s32.totalorder %s22, 4
    %s24 = scalar_select %p23, 0, %s22
    %s25 = sadd.s32 1, %s16
    %s26 = scalar_select %p23, %s25, %s16
    %p27 = scmp.ge.s32.totalorder %s26, 1
    %s28 = scalar_select %p27, 0, %s26
    %s29 = ssub.s32 %s17, %s24
    %s30 = ssub.s32 %s16, %s28
    %s31 = sor.u32 %s29, %s30
    %p32 = scmp.eq.s32.totalorder %s31, 0
    %s34 = sadd.s32 %s33, 1
    %s35 = scalar_select %p32, %s33, %s34
    %p38 = pneg %p32
    %p39 = scmp.eq.s32.totalorder %s9, 3
    %p40 = por %p38, %p39
    %p41 = scmp.ne.s32.totalorder %s33, %s36
    %p42 = scmp.eq.s32.totalorder %s9, 0
    %p43 = por %p41, %p42
    %p44 = scmp.ne.s32.totalorder %s33, %s36
    %p45 = scmp.eq.s32.totalorder %s14, 3
    %p46 = por %p44, %p45
    %p47 = scmp.ne.s32.totalorder %s36, %s37
    %p48 = scmp.eq.s32.totalorder %s14, 0
    %p49 = por %p47, %p48
    %p50 = scmp.ne.s32.totalorder %s36, %s37
    %p51 = scmp.eq.s32.totalorder %s15, 3
    %p52 = por %p50, %p51
    %p54 = scmp.ne.s32.totalorder %s37, %s53
    %p55 = scmp.eq.s32.totalorder %s15, 0
    %p56 = por %p54, %p55
    %s58 = sadd.s32 %s57, 1
    %p61 = scmp.eq.s32.totalorder %s9, 3
    %p62 = scmp.ne.s32.totalorder %s57, %s59
    %p63 = scmp.eq.s32.totalorder %s9, 0
    %p64 = por %p62, %p63
    %p65 = scmp.ne.s32.totalorder %s57, %s59
    %p66 = scmp.eq.s32.totalorder %s14, 3
    %p67 = por %p65, %p66
    %p68 = scmp.ne.s32.totalorder %s59, %s60
    %p69 = scmp.eq.s32.totalorder %s14, 0
    %p70 = por %p68, %p69
    %p71 = scmp.ne.s32.totalorder %s59, %s60
    %p72 = scmp.eq.s32.totalorder %s15, 3
    %p73 = por %p71, %p72
    %p75 = scmp.ne.s32.totalorder %s60, %s74
    %p76 = scmp.eq.s32.totalorder %s15, 0
    %p77 = por %p75, %p76
    %s78 = ssub.s32 %s16, %s28
    %p79 = scmp.eq.s32.totalorder %s78, 0
    %s81 = sadd.s32 %s80, 1
    %s82 = scalar_select %p79, %s80, %s81
    %p85 = pneg %p79
    %p86 = scmp.eq.s32.totalorder %s9, 3
    %p87 = por %p85, %p86
    %p88 = scmp.ne.s32.totalorder %s80, %s83
    %p89 = scmp.eq.s32.totalorder %s9, 0
    %p90 = por %p88, %p89
    %p91 = scmp.ne.s32.totalorder %s80, %s83
    %p92 = scmp.eq.s32.totalorder %s14, 3
    %p93 = por %p91, %p92
    %p94 = scmp.ne.s32.totalorder %s83, %s84
    %p95 = scmp.eq.s32.totalorder %s14, 0
    %p96 = por %p94, %p95
    %p97 = scmp.ne.s32.totalorder %s83, %s84
    %p98 = scmp.eq.s32.totalorder %s15, 3
    %p99 = por %p97, %p98
    %p101 = scmp.ne.s32.totalorder %s84, %s100
    %p102 = scmp.eq.s32.totalorder %s15, 0
    %p103 = por %p101, %p102
    %s104 = ssub.s32 %s17, %s24
    %s105 = ssub.s32 %s16, %s28
    %s106 = sor.u32 %s104, %s105
    %p107 = scmp.eq.s32.totalorder %s106, 0
    %s109 = sadd.s32 %s108, 1
    %s110 = scalar_select %p107, %s108, %s109
    %p113 = pneg %p107
    %p114 = scmp.eq.s32.totalorder %s9, 3
    %p115 = por %p113, %p114
    %p116 = scmp.ne.s32.totalorder %s108, %s111
    %p117 = scmp.eq.s32.totalorder %s9, 0
    %p118 = por %p116, %p117
    %p119 = scmp.ne.s32.totalorder %s108, %s111
    %p120 = scmp.eq.s32.totalorder %s14, 3
    %p121 = por %p119, %p120
    %p122 = scmp.ne.s32.totalorder %s111, %s112
    %p123 = scmp.eq.s32.totalorder %s14, 0
    %p124 = por %p122, %p123
    %p125 = scmp.ne.s32.totalorder %s111, %s112
    %p126 = scmp.eq.s32.totalorder %s15, 3
    %p127 = por %p125, %p126
    %p129 = scmp.ne.s32.totalorder %s112, %s128
    %p130 = scmp.eq.s32.totalorder %s15, 0
    %p131 = por %p129, %p130
    %p132 = scmp.le.s32.totalorder 1, %s9
    %p133 = scmp.lt.s32.totalorder %s9, 5
    %p134 = pnand %p132, %p133
    %p135 = pneg %p134
    // Predicated region
    $region9: #{tpu_custom_call.1} parent=5 // pred_check
      _
    $region10: #{tpu_custom_call.1} parent=5 // pred_check_branch
      %137 = sbr.rel (%p134) target = $region12
    $region11: #{tpu_custom_call.1} parent=5 // pred_region
      %s138 = ssub.s32 %s9, 1
      // Predicated region
      $region13: #{tpu_custom_call.1} parent=11 // pred_check
        %p139 = pneg %p70
      $region14: #{tpu_custom_call.1} parent=11 // pred_check_branch
        %141 = sbr.rel (%p139) target = $region16
      $region15: #{tpu_custom_call.1} parent=11 // pred_region
        _
      $region16: #{tpu_custom_call.1} parent=11 // pred_fallthru
        _
      // Predicated region
      $region17: #{tpu_custom_call.1} parent=11 // pred_check
        %p142 = pneg %p96
      $region18: #{tpu_custom_call.1} parent=11 // pred_check_branch
        %144 = sbr.rel (%p142) target = $region20
      $region19: #{tpu_custom_call.1} parent=11 // pred_region
        %s145 = smul.u32 8, %s18
        %p146 = scmp.lt.s32.totalorder %s145, 7
        %s147 = scalar_select %p146, %s145, 7
        %s148 = smul.addr %s147, 8
        %s149 = scalar_lea.vmem %s2, %s148
        %s150 = smul.u32 8, %s18
      $region20: #{tpu_custom_call.1} parent=11 // pred_fallthru
        _
    $region12: #{tpu_custom_call.1} parent=5 // pred_fallthru
      _
    %p151 = scmp.lt.s32.totalorder %s9, 4
    // Predicated region
    $region21: #{tpu_custom_call.1} parent=5 // pred_check
      %p152 = pneg %p151
    $region22: #{tpu_custom_call.1} parent=5 // pred_check_branch
      %154 = sbr.rel (%p152) target = $region24
    $region23: #{tpu_custom_call.1} parent=5 // pred_region
      // Predicated region
      $region25: #{tpu_custom_call.1} parent=23 // pred_check
        %p155 = pneg %p43
      $region26: #{tpu_custom_call.1} parent=23 // pred_check_branch
        %157 = sbr.rel (%p155) target = $region28
      $region27: #{tpu_custom_call.1} parent=23 // pred_region
        %s158 = smul.u32 8, %s16
        %p159 = scmp.lt.s32.totalorder %s17, 3
        %s160 = scalar_select %p159, %s17, 3
        %p161 = scmp.lt.s32.totalorder %s158, 7
        %s162 = scalar_select %p161, %s158, 7
        %s163 = smul.addr %s160, 8
        %s164 = sadd.s32 %s162, %s163
        %s165 = smul.addr %s164, 4
        %s166 = scalar_lea.vmem %s0, %s165
        %s167 = smul.u32 8, %s16
      $region28: #{tpu_custom_call.1} parent=23 // pred_fallthru
        _
    $region24: #{tpu_custom_call.1} parent=5 // pred_fallthru
      _
    %p168 = scmp.le.s32.totalorder 1, %s9
    %p169 = scmp.lt.s32.totalorder %s9, 5
    %p170 = pnand %p168, %p169
    %p171 = pneg %p170
    // Predicated region
    $region29: #{tpu_custom_call.1} parent=5 // pred_check
      _
    $region30: #{tpu_custom_call.1} parent=5 // pred_check_branch
      %173 = sbr.rel (%p170) target = $region32
    $region31: #{tpu_custom_call.1} parent=5 // pred_region
      %s174 = ssub.s32 %s9, 1
      %s175 = smul.u32 8, %s18
      %p176 = scmp.lt.s32.totalorder %s19, 3
      %s177 = scalar_select %p176, %s19, 3
      %p178 = scmp.lt.s32.totalorder %s175, 7
      %s179 = scalar_select %p178, %s175, 7
      %s180 = smul.addr %s177, 8
      %s181 = sadd.s32 %s179, %s180
      %s182 = smul.addr %s181, 4
      %s183 = scalar_lea.vmem %s0, %s182
      %p184 = pneg %p49
      %p185 = pneg %p46
      %p186 = pneg %p70
      %p187 = pneg %p67
      %s188 = smul.u32 8, %s18
      %p189 = scmp.lt.s32.totalorder %s188, 7
      %s190 = scalar_select %p189, %s188, 7
      %s191 = smul.addr %s190, 8
      %s192 = scalar_lea.vmem %s2, %s191
      %p193 = pneg %p96
      %p194 = pneg %p93
      %p195 = pneg %p124
      %p196 = pneg %p121
      %s197 = smul.u32 8, %s18
      %p198 = scmp.lt.s32.totalorder %s19, 3
      %s199 = scalar_select %p198, %s19, 3
      %p200 = scmp.lt.s32.totalorder %s197, 7
      %s201 = scalar_select %p200, %s197, 7
      %s202 = smul.addr %s199, 8
      %s203 = sadd.s32 %s201, %s202
      %s204 = smul.addr %s203, 8
      %s205 = scalar_lea.vmem %s3, %s204
      %s206 = smul.u32 8, %s18
      %p207 = scmp.lt.s32.totalorder %s19, 3
      %s208 = scalar_select %p207, %s19, 3
      %p209 = scmp.lt.s32.totalorder %s206, 7
      %s210 = scalar_select %p209, %s206, 7
      %s211 = smul.addr %s208, 8
      %s212 = sadd.s32 %s210, %s211
      %s213 = smul.addr %s212, 4
      %s214 = scalar_lea.vmem %s0, %s213
      %s215 = smul.u32 8, %s18
      %s216 = smul.u32 8, %s18
      %p217 = scmp.lt.s32.totalorder %s216, 7
      %s218 = scalar_select %p217, %s216, 7
      %s219 = smul.addr %s218, 8
      %s220 = scalar_lea.vmem %s2, %s219
      %s221 = smul.u32 8, %s18
      %s222 = smul.u32 8, %s18
      %p223 = scmp.lt.s32.totalorder %s19, 3
      %s224 = scalar_select %p223, %s19, 3
      %p225 = scmp.lt.s32.totalorder %s222, 7
      %s226 = scalar_select %p225, %s222, 7
      %s227 = smul.addr %s224, 8
      %s228 = sadd.s32 %s226, %s227
      %s229 = smul.addr %s228, 8
      %s230 = scalar_lea.vmem %s3, %s229
      %s231 = smul.u32 8, %s18
      %v233 = vld [vmem:[%s214] sm:$0xf]
      %v234 = vld [vmem:[%s214 + $0x4] sm:$0xf]
      %v235 = vld [vmem:[%s214 + $0x8] sm:$0xf]
      %v236 = vld [vmem:[%s214 + $0xc] sm:$0xf]
      %v237 = vld [vmem:[%s214 + $0x10] sm:$0xf]
      %v238 = vld [vmem:[%s214 + $0x14] sm:$0xf]
      %v239 = vld [vmem:[%s214 + $0x18] sm:$0xf]
      %v240 = vld [vmem:[%s214 + $0x1c] sm:$0xf]
      %v241 = vld [vmem:[%s1] sm:$0xf]
      %v242 = vld [vmem:[%s1 + $0x4] sm:$0xf]
      %v243 = vld [vmem:[%s1 + $0x8] sm:$0xf]
      %v244 = vld [vmem:[%s1 + $0xc] sm:$0xf]
      %v245 = vld [vmem:[%s1 + $0x10] sm:$0xf]
      %v246 = vld [vmem:[%s1 + $0x14] sm:$0xf]
      %v247 = vld [vmem:[%s1 + $0x18] sm:$0xf]
      %v248 = vld [vmem:[%s1 + $0x1c] sm:$0xf]
      %v249 = vld [vmem:[%s1 + $0x20] sm:$0xf]
      %v250 = vld [vmem:[%s1 + $0x24] sm:$0xf]
      %v251 = vld [vmem:[%s1 + $0x28] sm:$0xf]
      %v252 = vld [vmem:[%s1 + $0x2c] sm:$0xf]
      %v253 = vld [vmem:[%s1 + $0x30] sm:$0xf]
      %v254 = vld [vmem:[%s1 + $0x34] sm:$0xf]
      %v255 = vld [vmem:[%s1 + $0x38] sm:$0xf]
      %v256 = vld [vmem:[%s1 + $0x3c] sm:$0xf]
      %v257 = vld [vmem:[%s220] sm:$0xff]
      %v258 = vld [vmem:[%s220 + $0x8] sm:$0xff]
      %v259 = vld [vmem:[%s220 + $0x10] sm:$0xff]
      %v260 = vld [vmem:[%s220 + $0x18] sm:$0xff]
      %v261 = vld [vmem:[%s220 + $0x20] sm:$0xff]
      %v262 = vld [vmem:[%s220 + $0x28] sm:$0xff]
      %v263 = vld [vmem:[%s220 + $0x30] sm:$0xff]
      %v264 = vld [vmem:[%s220 + $0x38] sm:$0xff]
      %v273 = vunpack.c.l.b16 %v233
      %v274 = vunpack.c.l.b16 %v234
      %v275 = vunpack.c.l.b16 %v235
      %v276 = vunpack.c.l.b16 %v236
      %v277 = vunpack.c.l.b16 %v237
      %v278 = vunpack.c.l.b16 %v238
      %v279 = vunpack.c.l.b16 %v239
      %v280 = vunpack.c.l.b16 %v240
      %v281 = vpack.c.b16 %v274, %v273
      %v282 = vpack.c.b16 %v276, %v275
      %v283 = vpack.c.b16 %v278, %v277
      %v284 = vpack.c.b16 %v280, %v279
      %v305 = vunpack.c.l.b16 %v241
      %v306 = vunpack.c.l.b16 %v242
      %v307 = vunpack.c.l.b16 %v243
      %v308 = vunpack.c.l.b16 %v244
      %v309 = vunpack.c.l.b16 %v245
      %v310 = vunpack.c.l.b16 %v246
      %v311 = vunpack.c.l.b16 %v247
      %v312 = vunpack.c.l.b16 %v248
      %v313 = vunpack.c.l.b16 %v249
      %v314 = vunpack.c.l.b16 %v250
      %v315 = vunpack.c.l.b16 %v251
      %v316 = vunpack.c.l.b16 %v252
      %v317 = vunpack.c.l.b16 %v253
      %v318 = vunpack.c.l.b16 %v254
      %v319 = vunpack.c.l.b16 %v255
      %v320 = vunpack.c.l.b16 %v256
      %v321 = vpack.c.b16 %v306, %v305
      %v322 = vpack.c.b16 %v308, %v307
      %v323 = vpack.c.b16 %v310, %v309
      %v324 = vpack.c.b16 %v312, %v311
      %v325 = vpack.c.b16 %v314, %v313
      %v326 = vpack.c.b16 %v316, %v315
      %v327 = vpack.c.b16 %v318, %v317
      %v328 = vpack.c.b16 %v320, %v319
      %337 = vmatprep.subr.bf16.mxu0 0
      %338 = vmatpush1.bf16.msra.mxu0 %v321
      %339 = vmatprep.subr.bf16.mxu0 0
      %340 = vmatpush1.bf16.msra.mxu0 %v322
      %341 = vmatprep.subr.bf16.mxu0 0
      %342 = vmatpush1.bf16.msra.mxu0 %v323
      %343 = vmatprep.subr.bf16.mxu0 0
      %344 = vmatpush1.bf16.msra.mxu0 %v324
      %345 = vmatprep.subr.bf16.mxu0 0
      %346 = vmatpush1.bf16.msra.mxu0 %v325
      %347 = vmatprep.subr.bf16.mxu0 0
      %348 = vmatpush1.bf16.msra.mxu0 %v326
      %349 = vmatprep.subr.bf16.mxu0 0
      %350 = vmatpush1.bf16.msra.mxu0 %v327
      %351 = vmatprep.subr.bf16.mxu0 0
      %352 = vmatpush1.bf16.msra.mxu0 %v328
      %353 = vmatprep.subr.bf16.mxu0 0
      %354 = vmatpush1.bf16.msra.mxu0 0
      %355 = vmatprep.subr.bf16.mxu0 0
      %356 = vmatpush1.bf16.msra.mxu0 0
      %357 = vmatprep.subr.bf16.mxu0 0
      %358 = vmatpush1.bf16.msra.mxu0 0
      %359 = vmatprep.subr.bf16.mxu0 0
      %360 = vmatpush1.bf16.msra.mxu0 0
      %361 = vmatprep.subr.bf16.mxu0 0
      %362 = vmatpush1.bf16.msra.mxu0 0
      %363 = vmatprep.subr.bf16.mxu0 0
      %364 = vmatpush1.bf16.msra.mxu0 0
      %365 = vmatprep.subr.bf16.mxu0 0
      %366 = vmatpush1.bf16.msra.mxu0 0
      %367 = vmatprep.subr.bf16.mxu0 0
      %368 = vmatpush1.bf16.msra.mxu0 0
      %369 = vmatprep.mubr.bf16.mxu0 0
      %370 = vmatmul.mubr.bf16.gmra.mrb[0].mxu0 %v281
      %v371 = vpop.f32.mrb[0].mxu0
      %v372 = vadd.f32 %v257, %v371
      %v373 = vpop.f32.mrb[0].mxu0
      %v374 = vpop.f32.mrb[0].mxu0
      %v375 = vadd.f32 %v258, %v374
      %v376 = vpop.f32.mrb[0].mxu0
      %377 = vmatprep.mubr.bf16.mxu0 0
      %378 = vmatmul.mubr.bf16.gmra.mrb[0].mxu0 %v282
      %v379 = vpop.f32.mrb[0].mxu0
      %v380 = vadd.f32 %v259, %v379
      %v381 = vpop.f32.mrb[0].mxu0
      %v382 = vpop.f32.mrb[0].mxu0
      %v383 = vadd.f32 %v260, %v382
      %v384 = vpop.f32.mrb[0].mxu0
      %385 = vmatprep.mubr.bf16.mxu0 0
      %386 = vmatmul.mubr.bf16.gmra.mrb[0].mxu0 %v283
      %v387 = vpop.f32.mrb[0].mxu0
      %v388 = vadd.f32 %v261, %v387
      %v389 = vpop.f32.mrb[0].mxu0
      %v390 = vpop.f32.mrb[0].mxu0
      %v391 = vadd.f32 %v262, %v390
      %v392 = vpop.f32.mrb[0].mxu0
      %393 = vmatprep.mubr.bf16.mxu0 0
      %394 = vmatmul.mubr.bf16.gmra.mrb[0].mxu0 %v284
      %v395 = vpop.f32.mrb[0].mxu0
      %v396 = vadd.f32 %v263, %v395
      %v397 = vpop.f32.mrb[0].mxu0
      %v398 = vpop.f32.mrb[0].mxu0
      %v399 = vadd.f32 %v264, %v398
      %v400 = vpop.f32.mrb[0].mxu0
      %401 = vdwg.mxu0
      %vm402 = vcmask 261120
      %403 = vst.msk [vmem:[%s230] sm:$0xff] %vm402, %v372
      %404 = vst.msk [vmem:[%s230 + $0x8] sm:$0xff] %vm402, %v375
      %405 = vst.msk [vmem:[%s230 + $0x10] sm:$0xff] %vm402, %v380
      %406 = vst.msk [vmem:[%s230 + $0x18] sm:$0xff] %vm402, %v383
      %407 = vst.msk [vmem:[%s230 + $0x20] sm:$0xff] %vm402, %v388
      %408 = vst.msk [vmem:[%s230 + $0x28] sm:$0xff] %vm402, %v391
      %409 = vst.msk [vmem:[%s230 + $0x30] sm:$0xff] %vm402, %v396
      %410 = vst.msk [vmem:[%s230 + $0x38] sm:$0xff] %vm402, %v399
      %s411 = smul.u32 8, %s18
      %p412 = scmp.lt.s32.totalorder %s19, 3
      %s413 = scalar_select %p412, %s19, 3
      %p414 = scmp.lt.s32.totalorder %s411, 7
      %s415 = scalar_select %p414, %s411, 7
      %s416 = smul.addr %s413, 8
      %s417 = sadd.s32 %s415, %s416
      %s418 = smul.addr %s417, 8
      %s419 = scalar_lea.vmem %s3, %s418
      // Predicated region
      $region33: #{tpu_custom_call.1} parent=31 // pred_check
        %p420 = pneg %p121
      $region34: #{tpu_custom_call.1} parent=31 // pred_check_branch
        %422 = sbr.rel (%p420) target = $region36
      $region35: #{tpu_custom_call.1} parent=31 // pred_region
        %s423 = smul.u32 8, %s18
      $region36: #{tpu_custom_call.1} parent=31 // pred_fallthru
        _
    $region32: #{tpu_custom_call.1} parent=5 // pred_fallthru
      _
    %p424 = scmp.le.s32.totalorder 2, %s9
    // Predicated region
    $region37: #{tpu_custom_call.1} parent=5 // pred_check
      %p425 = pneg %p424
    $region38: #{tpu_custom_call.1} parent=5 // pred_check_branch
      %427 = sbr.rel (%p425) target = $region40
    $region39: #{tpu_custom_call.1} parent=5 // pred_region
      %s428 = ssub.s32 %s9, 2
      // Predicated region
      $region41: #{tpu_custom_call.1} parent=39 // pred_check
        %p429 = pneg %p127
      $region42: #{tpu_custom_call.1} parent=39 // pred_check_branch
        %431 = sbr.rel (%p429) target = $region44
      $region43: #{tpu_custom_call.1} parent=39 // pred_region
        %s432 = smul.u32 8, %s20
        %p433 = scmp.lt.s32.totalorder %s21, 3
        %s434 = scalar_select %p433, %s21, 3
        %p435 = scmp.lt.s32.totalorder %s432, 7
        %s436 = scalar_select %p435, %s432, 7
        %s437 = smul.addr %s434, 8
        %s438 = sadd.s32 %s436, %s437
        %s439 = smul.addr %s438, 8
        %s440 = scalar_lea.vmem %s3, %s439
      $region44: #{tpu_custom_call.1} parent=39 // pred_fallthru
        _
    $region40: #{tpu_custom_call.1} parent=5 // pred_fallthru
      _
  $region6: #{tpu_custom_call.1} parent=0 // loop_footer
    %s13 = sadd.s32 1, %s9
  $region7: #{tpu_custom_call.1} parent=0 // loop_footer_branch
    %8 = sbr.rel target = $region3
  $region8: #{tpu_custom_call.1} parent=0 // loop_exit
    _

</llo_original>
